<compile_context>
chip_gen: v5e
topology: v5e:2x2
jax: 0.10.0
libtpu: 0.0.40
codegen_flags: <defaults>
</compile_context>

<pallas_src>
import jax
import jax.numpy as jnp
from jax import lax
from jax.experimental import pallas as pl
from jax.experimental.pallas import tpu as pltpu


# ----------------------------- Pallas kernel --------------------------------
def patch_embed_kernel(xp_ref, w_ref, b_ref, o_ref, acc_ref):
    """Tiled (M,K)x(K,E) matmul + bias.  Grid = (M/tm, E/tn, K/tk)."""
    k = pl.program_id(2)

    @pl.when(k == 0)
    def _():
        acc_ref[...] = jnp.zeros_like(acc_ref)

    acc_ref[...] += jnp.dot(xp_ref[...], w_ref[...],
                            preferred_element_type=jnp.float32)

    @pl.when(k == pl.num_programs(2) - 1)
    def _():
        o_ref[...] = (acc_ref[...] + b_ref[...]).astype(o_ref.dtype)


def _pick_tile(dim, cap):
    """Largest even tile: full dim if small, else cap when it divides."""
    if dim <= cap:
        return dim
    if dim % cap == 0:
        return cap
    return dim  # fallback: whole dim (fine at the sizes used here)


def patch_embed_1d(x, weight, bias, *, patch_size):
    """x: (B, C, V) f32. weight: (E, C, S) conv weight. bias: (E,).
    Returns (B, V // S, E), matching Conv1d(stride=S).transpose(1, 2)."""
    B, C, V = x.shape
    E = weight.shape[0]
    S = patch_size
    P = V // S
    K = C * S
    M = B * P

    # --- layout plumbing in the wrapper (not compute) ------------------------
    # (B, C, V) -> (B, C, P, S) -> (B, P, C, S) -> (B*P, C*S): batch folded into
    # the matmul M dim, patch contents flattened in (c, s) order to match the
    # row-major flattening of the (E, C, S) conv weight.
    xp = x[:, :, :P * S].reshape(B, C, P, S).transpose(0, 2, 1, 3).reshape(M, K)
    w = weight.reshape(E, K).T            # (K, E)
    b2 = bias.reshape(1, E)               # (1, E)

    tm = _pick_tile(M, 256)
    tn = _pick_tile(E, 256)
    tk = _pick_tile(K, 512)
    grid = (M // tm, E // tn, K // tk)

    out_flat = pl.pallas_call(
        patch_embed_kernel,
        out_shape=jax.ShapeDtypeStruct((M, E), x.dtype),
        grid_spec=pltpu.PrefetchScalarGridSpec(
            num_scalar_prefetch=0,
            grid=grid,
            in_specs=[
                pl.BlockSpec((tm, tk), lambda i, j, k: (i, k)),
                pl.BlockSpec((tk, tn), lambda i, j, k: (k, j)),
                pl.BlockSpec((1, tn), lambda i, j, k: (0, j)),
            ],
            out_specs=pl.BlockSpec((tm, tn), lambda i, j, k: (i, j)),
            scratch_shapes=[pltpu.VMEM((tm, tn), jnp.float32)],
        ),
        compiler_params=pltpu.CompilerParams(
            dimension_semantics=("parallel", "parallel", "arbitrary")),
    )(xp, w, b2)

    return out_flat.reshape(B, P, E)


# ------------------- pure-JAX reference (independent path) ------------------
def patch_embed_1d_ref(x, weight, bias, *, patch_size):
    y = lax.conv_general_dilated(
        x, weight,
        window_strides=(patch_size,),
        padding="VALID",
        dimension_numbers=("NCH", "OIH", "NCH"))
    y = y + bias[None, :, None]
    return jnp.transpose(y, (0, 2, 1))     # (B, num_patches, embed_dim)


# --------------------------------- demo --------------------------------------
if __name__ == "__main__":
    # Small shapes consistent with the module (real module: C=128, S=4, E=1024,
    # V=512 — same kernel, just a bigger grid).
    B = 2            # batch
    C = 16           # in_chans
    V = 32           # time_len
    S = 4            # patch_size
    E = 128          # embed_dim (multiple of 128 -> lane-dense output stores)

    key = jax.random.PRNGKey(0)
    kx, kw, kb = jax.random.split(key, 3)
    x = jax.random.normal(kx, (B, C, V), jnp.float32)
    weight = 0.02 * jax.random.normal(kw, (E, C, S), jnp.float32)
    bias = 0.02 * jax.random.normal(kb, (E,), jnp.float32)

    out = patch_embed_1d(x, weight, bias, patch_size=S)
    out = jax.block_until_ready(out)

    ref = patch_embed_1d_ref(x, weight, bias, patch_size=S)
    assert out.shape == (B, V // S, E), out.shape
    assert jnp.allclose(out, ref, atol=1e-4, rtol=1e-4), \
        f"max abs diff {jnp.max(jnp.abs(out - ref))}"

    print("KERNEL_OK")
</pallas_src>

<mosaic_0001>
module attributes {stable_mosaic.version = 11 : i64} {
  func.func @patch_embed_kernel(%arg0: i32, %arg1: i32, %arg2: i32, %arg3: memref<16x64xf32, #tpu.memory_space<vmem>>, %arg4: memref<64x128xf32, #tpu.memory_space<vmem>>, %arg5: memref<1x128xf32, #tpu.memory_space<vmem>>, %arg6: memref<16x128xf32, #tpu.memory_space<vmem>>, %arg7: memref<16x128xf32, #tpu.memory_space<vmem>>) attributes {dimension_semantics = [#tpu.dimension_semantics<parallel>, #tpu.dimension_semantics<parallel>, #tpu.dimension_semantics<arbitrary>], iteration_bounds = array<i64: 1, 1, 1>, scalar_prefetch = 0 : i64, scratch_operands = 1 : i64, tpu.core_type = #tpu.core_type<tc>, window_params = [{transform_indices = @transform_0, window_bounds = array<i64: 16, 64>}, {transform_indices = @transform_1, window_bounds = array<i64: 64, 128>}, {transform_indices = @transform_2, window_bounds = array<i64: 1, 128>}, {transform_indices = @transform_3, window_bounds = array<i64: 16, 128>}]} {
    %c0_i32 = arith.constant 0 : i32
    %0 = arith.cmpi eq, %arg2, %c0_i32 : i32
    %1 = arith.extui %0 : i1 to i32
    %c0_i32_0 = arith.constant 0 : i32
    %2 = arith.cmpi ne, %1, %c0_i32_0 : i32
    scf.if %2 {
      %cst_10 = arith.constant 0.000000e+00 : f32
      %12 = vector.broadcast %cst_10 : f32 to vector<16x128xf32>
      %c0_11 = arith.constant 0 : index
      %c0_12 = arith.constant 0 : index
      %13 = vector.load %arg7[%c0_11, %c0_12] : memref<16x128xf32, #tpu.memory_space<vmem>>, vector<16x128xf32>
      tpu.vector_store %arg7[%c0_11, %c0_12], %12 {strides = array<i32>} : memref<16x128xf32, #tpu.memory_space<vmem>>, vector<16x128xf32>,
    } else {
    }
    %c0 = arith.constant 0 : index
    %c0_1 = arith.constant 0 : index
    %3 = vector.load %arg7[%c0, %c0_1] : memref<16x128xf32, #tpu.memory_space<vmem>>, vector<16x128xf32>
    %c0_2 = arith.constant 0 : index
    %c0_3 = arith.constant 0 : index
    %4 = vector.load %arg3[%c0_2, %c0_3] : memref<16x64xf32, #tpu.memory_space<vmem>>, vector<16x64xf32>
    %c0_4 = arith.constant 0 : index
    %c0_5 = arith.constant 0 : index
    %5 = vector.load %arg4[%c0_4, %c0_5] : memref<64x128xf32, #tpu.memory_space<vmem>>, vector<64x128xf32>
    %cst = arith.constant dense<0.000000e+00> : vector<16x128xf32>
    %6 = tpu.matmul %4, %5, %cst {dimension_numbers = #tpu.dot_dimension_numbers<[1], [0], [0], [1], [0, 0, 1, 1], [], []>} : vector<16x64xf32>, vector<64x128xf32>, vector<16x128xf32> -> vector<16x128xf32>
    %7 = arith.addf %3, %6 : vector<16x128xf32>
    %c0_6 = arith.constant 0 : index
    %c0_7 = arith.constant 0 : index
    %8 = vector.load %arg7[%c0_6, %c0_7] : memref<16x128xf32, #tpu.memory_space<vmem>>, vector<16x128xf32>
    tpu.vector_store %arg7[%c0_6, %c0_7], %7 {strides = array<i32>} : memref<16x128xf32, #tpu.memory_space<vmem>>, vector<16x128xf32>,
    %c0_i32_8 = arith.constant 0 : i32
    %9 = arith.cmpi eq, %arg2, %c0_i32_8 : i32
    %10 = arith.extui %9 : i1 to i32
    %c0_i32_9 = arith.constant 0 : i32
    %11 = arith.cmpi ne, %10, %c0_i32_9 : i32
    scf.if %11 {
      %c0_10 = arith.constant 0 : index
      %c0_11 = arith.constant 0 : index
      %12 = vector.load %arg7[%c0_10, %c0_11] : memref<16x128xf32, #tpu.memory_space<vmem>>, vector<16x128xf32>
      %c0_12 = arith.constant 0 : index
      %c0_13 = arith.constant 0 : index
      %13 = vector.load %arg5[%c0_12, %c0_13] : memref<1x128xf32, #tpu.memory_space<vmem>>, vector<1x128xf32>
      %14 = vector.broadcast %13 : vector<1x128xf32> to vector<16x128xf32>
      %15 = arith.addf %12, %14 : vector<16x128xf32>
      %c0_14 = arith.constant 0 : index
      %c0_15 = arith.constant 0 : index
      %16 = vector.load %arg6[%c0_14, %c0_15] : memref<16x128xf32, #tpu.memory_space<vmem>>, vector<16x128xf32>
      tpu.vector_store %arg6[%c0_14, %c0_15], %15 {strides = array<i32>} : memref<16x128xf32, #tpu.memory_space<vmem>>, vector<16x128xf32>,
    } else {
    }
    return
  }
  func.func @transform_0(%arg0: i32, %arg1: i32, %arg2: i32) -> (i32, i32) {
    %c0_i32 = arith.constant 0 : i32
    return %arg0, %arg2 : i32, i32
  }
  func.func @transform_1(%arg0: i32, %arg1: i32, %arg2: i32) -> (i32, i32) {
    %c0_i32 = arith.constant 0 : i32
    return %arg2, %arg1 : i32, i32
  }
  func.func @transform_2(%arg0: i32, %arg1: i32, %arg2: i32) -> (i32, i32) {
    %c0_i32 = arith.constant 0 : i32
    %c0_i32_0 = arith.constant 0 : i32
    return %c0_i32, %arg1 : i32, i32
  }
  func.func @transform_3(%arg0: i32, %arg1: i32, %arg2: i32) -> (i32, i32) {
    %c0_i32 = arith.constant 0 : i32
    return %arg0, %arg1 : i32, i32
  }
}

</mosaic_0001>

<llo_original>
// kernel: tpu_custom_call.1
$region0: #{tpu_custom_call.1}
  #allocation0 [shape = 'u32[]', space=smem, size = 0x4, offset = 0x4, fixed_abs, tag = 'smem constant byte address 0x4 - core index']
  #allocation1 [shape = 'u32[72,128]{1,0:T(1,128)}', space=vmem, size = 0x9000, scoped, tag = 'internal scratch']
  #allocation2 [shape = 'f32[16,128]{1,0:T(8,128)}', space=vmem, size = 0x2000, scoped, tag = 'scratch operand']
  %s0 = inlined_call_operand.hbm [shape: f32[16,64], index: 0, kind: input, shape index: {}]
  %s1 = inlined_call_operand.hbm [shape: f32[64,128], index: 1, kind: input, shape index: {}]
  %s2 = inlined_call_operand.vmem [shape: f32[1,128], index: 2, kind: input, shape index: {}]
  %s3 = inlined_call_operand.hbm [shape: f32[16,128], index: 3, kind: output, shape index: {}]
  %s4 = sld [smem:[#allocation0]]
  $region38: #{tpu_custom_call.1} parent=0
    _
  %s6 = ssub.s32 1, %s4
  %s7 = scalar_select 0, %s6, %s4
  $region1: #{tpu_custom_call.1} parent=0
    #allocation3 [shape = 'u8[8192]{0}', space=vmem, size = 0x2000, scoped, tag = 'input window, operand 0, single buffered']
    #allocation4 [shape = 's32[1]{0}', space=sflag, size = 0x4, scoped, tag = 'scoped memory for tpu_custom_call.1']
    #allocation5 [shape = 's32[1]{0}', space=sflag, size = 0x4, scoped, tag = 'scoped memory for tpu_custom_call.1']
    #allocation6 [shape = 'u8[32768]{0}', space=vmem, size = 0x8000, scoped, tag = 'input window, operand 1, single buffered']
    #allocation7 [shape = 's32[1]{0}', space=sflag, size = 0x4, scoped, tag = 'scoped memory for tpu_custom_call.1']
    #allocation8 [shape = 'u8[8192]{0}', space=vmem, size = 0x2000, scoped, tag = 'output window, operand 0, single buffered']
    %8 = vsyncpa [#allocation4], 0
    %9 = vsyncpa [#allocation7], 0
    %10 = vsyncpa [#allocation5], 0
    // Predicated region
    $region2: #{tpu_custom_call.1} parent=1 // pred_check
      _
    $region3: #{tpu_custom_call.1} parent=1 // pred_check_branch
      %12 = sbr.rel (0) target = $region5
    $region4: #{tpu_custom_call.1} parent=1 // pred_region
      %14 = vsyncadd [#allocation4], 0
      %s15 = sshll.u32 %s0, 4
      %s16 = int_to_ptr.hbm [resolvable:$true] %s15
      %s17 = sshll.u32 [#allocation3], 4
      %s18 = int_to_ptr.vmem [resolvable:$true] %s17
      %23 = dma.hbm_to_vmem [thread:$0]  %s16, 256, %s18, [#allocation4], 128, 128, 8
    $region5: #{tpu_custom_call.1} parent=1 // pred_fallthru
      _
    // Predicated region
    $region6: #{tpu_custom_call.1} parent=1 // pred_check
      _
    $region7: #{tpu_custom_call.1} parent=1 // pred_check_branch
      %25 = sbr.rel (0) target = $region9
    $region8: #{tpu_custom_call.1} parent=1 // pred_region
      %27 = vsyncadd [#allocation7], 0
      %s28 = sshll.u32 %s1, 4
      %s29 = int_to_ptr.hbm [resolvable:$true] %s28
      %s30 = sshll.u32 [#allocation6], 4
      %s31 = int_to_ptr.vmem [resolvable:$true] %s30
      %36 = dma.hbm_to_vmem [thread:$0]  %s29, 1024, %s31, [#allocation7], 128, 128, 8
    $region9: #{tpu_custom_call.1} parent=1 // pred_fallthru
      _
    // Predicated region
    $region10: #{tpu_custom_call.1} parent=1 // pred_check
      _
    $region11: #{tpu_custom_call.1} parent=1 // pred_check_branch
      %38 = sbr.rel (0) target = $region13
    $region12: #{tpu_custom_call.1} parent=1 // pred_region
      _
    $region13: #{tpu_custom_call.1} parent=1 // pred_fallthru
      _
    // Predicated region
    $region14: #{tpu_custom_call.1} parent=1 // pred_check
      _
    $region15: #{tpu_custom_call.1} parent=1 // pred_check_branch
      %40 = sbr.rel (0) target = $region17
    $region16: #{tpu_custom_call.1} parent=1 // pred_region
      %42 = dma.done [#allocation4], 256
    $region17: #{tpu_custom_call.1} parent=1 // pred_fallthru
      _
    // Predicated region
    $region18: #{tpu_custom_call.1} parent=1 // pred_check
      _
    $region19: #{tpu_custom_call.1} parent=1 // pred_check_branch
      %44 = sbr.rel (0) target = $region21
    $region20: #{tpu_custom_call.1} parent=1 // pred_region
      %46 = dma.done [#allocation7], 1024
    $region21: #{tpu_custom_call.1} parent=1 // pred_fallthru
      _
    %p47 = scmp.eq.s32.totalorder 0, 0
    // Predicated region
    $region22: #{tpu_custom_call.1} parent=1 // pred_check
      %p48 = pneg %p47
    $region23: #{tpu_custom_call.1} parent=1 // pred_check_branch
      %50 = sbr.rel (%p48) target = $region25
    $region24: #{tpu_custom_call.1} parent=1 // pred_region
      %51 = vst [vmem:[#allocation2] sm:$0xff] 0.0
      %52 = vst [vmem:[#allocation2 + $0x8] sm:$0xff] 0.0
    $region25: #{tpu_custom_call.1} parent=1 // pred_fallthru
      _
    %v53 = vld [vmem:[#allocation2] sm:$0xff]
    %v54 = vld [vmem:[#allocation2 + $0x8] sm:$0xff]
    %v55 = vld [vmem:[#allocation3] sm:$0xff]
    %v56 = vld [vmem:[#allocation3 + $0x8] sm:$0xff]
    %v57 = vld [vmem:[#allocation6] sm:$0xff]
    %v58 = vld [vmem:[#allocation6 + $0x8] sm:$0xff]
    %v59 = vld [vmem:[#allocation6 + $0x10] sm:$0xff]
    %v60 = vld [vmem:[#allocation6 + $0x18] sm:$0xff]
    %v61 = vld [vmem:[#allocation6 + $0x20] sm:$0xff]
    %v62 = vld [vmem:[#allocation6 + $0x28] sm:$0xff]
    %v63 = vld [vmem:[#allocation6 + $0x30] sm:$0xff]
    %v64 = vld [vmem:[#allocation6 + $0x38] sm:$0xff]
    %vm65 = vcmask 523264
    %v67 = vsel %vm65, %v55, 0
    %v70 = vsel %vm65, %v56, 0
    %72 = vmatpush.msra.mxu0 0.0
    %73 = vmatpush.msra.mxu0 0.0
    %74 = vmatpush.msra.mxu0 0.0
    %75 = vmatpush.msra.mxu0 0.0
    %76 = vmatpush.msra.mxu0 0.0
    %77 = vmatpush.msra.mxu0 0.0
    %78 = vmatpush.msra.mxu0 0.0
    %79 = vmatpush.msra.mxu0 0.0
    %80 = vmatpush.msra.mxu0 %v64
    %81 = vmatpush.msra.mxu0 %v63
    %82 = vmatpush.msra.mxu0 %v62
    %83 = vmatpush.msra.mxu0 %v61
    %84 = vmatpush.msra.mxu0 %v60
    %85 = vmatpush.msra.mxu0 %v59
    %86 = vmatpush.msra.mxu0 %v58
    %87 = vmatpush.msra.mxu0 %v57
    %88 = vmatmul.f32.gmra.mxu0 %v67
    %v89 = vpop.f32.mrf.mxu0
    %v90 = vadd.f32 0.0, %v89
    %91 = vmatmul.f32.gmra.mxu0 %v70
    %v92 = vpop.f32.mrf.mxu0
    %v93 = vadd.f32 0.0, %v92
    %94 = vdwg.mxu0
    %v95 = vadd.f32 %v53, %v90
    %v96 = vadd.f32 %v54, %v93
    %97 = vst [vmem:[#allocation2] sm:$0xff] %v95
    %98 = vst [vmem:[#allocation2 + $0x8] sm:$0xff] %v96
    // Predicated region
    $region26: #{tpu_custom_call.1} parent=1 // pred_check
      %p99 = pneg %p47
    $region27: #{tpu_custom_call.1} parent=1 // pred_check_branch
      %101 = sbr.rel (%p99) target = $region29
    $region28: #{tpu_custom_call.1} parent=1 // pred_region
      %v102 = vld [vmem:[#allocation2] sm:$0xff]
      %v103 = vld [vmem:[#allocation2 + $0x8] sm:$0xff]
      %v104 = vld [vmem:[%s2] sm:$0x1]
      %v106 = vperm.slane %v104, 0
      %v108 = vadd.f32 %v102, %v106
      %v109 = vadd.f32 %v103, %v106
      %110 = vst [vmem:[#allocation8] sm:$0xff] %v108
      %111 = vst [vmem:[#allocation8 + $0x8] sm:$0xff] %v109
    $region29: #{tpu_custom_call.1} parent=1 // pred_fallthru
      _
    // Predicated region
    $region30: #{tpu_custom_call.1} parent=1 // pred_check
      _
    $region31: #{tpu_custom_call.1} parent=1 // pred_check_branch
      %113 = sbr.rel (0) target = $region33
    $region32: #{tpu_custom_call.1} parent=1 // pred_region
      %115 = vsyncadd [#allocation5], 0
      %s116 = sshll.u32 [#allocation8], 4
      %s117 = int_to_ptr.vmem [resolvable:$true] %s116
      %s118 = sshll.u32 %s3, 4
      %s119 = int_to_ptr.hbm [resolvable:$true] %s118
      %124 = dma.vmem_to_hbm [thread:$0]  %s117, 256, %s119, [#allocation5], 128, 128, 8
    $region33: #{tpu_custom_call.1} parent=1 // pred_fallthru
      _
    // Predicated region
    $region34: #{tpu_custom_call.1} parent=1 // pred_check
      _
    $region35: #{tpu_custom_call.1} parent=1 // pred_check_branch
      %126 = sbr.rel (0) target = $region37
    $region36: #{tpu_custom_call.1} parent=1 // pred_region
      %128 = dma.done [#allocation5], 256
    $region37: #{tpu_custom_call.1} parent=1 // pred_fallthru
      _
    %129 = vsyncpa [#allocation4], 1
    %130 = vsyncpa [#allocation7], 1
    %131 = vsyncpa [#allocation5], 1

</llo_original>
